<compile_context>
chip_gen: v7x
topology: tpu7x:2x2x1
jax: 0.10.0
libtpu: 0.0.40
codegen_flags: <defaults>
</compile_context>

<pallas_src>
import functools
import math

import jax
import jax.numpy as jnp
from jax import lax
from jax.experimental import pallas as pl
from jax.experimental.pallas import tpu as pltpu

SQRT3 = math.sqrt(3.0)
EPS = 1e-12          # eps used by torch.nn.functional.normalize inside e3nn
EPS2 = EPS * EPS


def _round_up(x, m):
    return ((x + m - 1) // m) * m


def _edge_sh_kernel(has_shift, *refs):
    """Per-edge-tile math, channels-first (C, TE): edges on the 128-lane axis."""
    if has_shift:
        dst_ref, src_ref, shift_ref, out_ref = refs
        vec = (dst_ref[...] - src_ref[...]) + shift_ref[...]       # (3, TE)
    else:
        dst_ref, src_ref, out_ref = refs
        vec = dst_ref[...] - src_ref[...]                           # (3, TE)

    norm2 = jnp.sum(vec * vec, axis=0, keepdims=True)               # (1, TE)
    length = jnp.sqrt(norm2)                                        # exact sqrt (EUP)
    # 1 / max(||v||, eps) == rsqrt(max(||v||^2, eps^2)) -> single EUP op, no VALU divide.
    inv = lax.rsqrt(jnp.maximum(norm2, EPS2))                       # (1, TE)
    u = vec * inv                                                   # (3, TE)

    # Fused 8-sublane output slab: rows 0-2 = edge_vec, row 3 = length,
    # rows 4-7 = edge_sh = [1, sqrt(3)*u]. One dense, unmasked store per tile.
    out_ref[...] = jnp.concatenate(
        [vec, length, jnp.ones_like(length), SQRT3 * u], axis=0)    # (8, TE)


def spherical_harmonic_edge_attrs(pos, edge_index, shift=None, *, tile_e=512):
    """pos: (N, 3) f32; edge_index: (2, E) int; shift: (E, 3) f32 or None.

    Returns (edge_vec (E,3), edge_lengths (E,), edge_sh (E,4)).
    Note: out-of-range edge indices are clamped by jnp.take (PyTorch would raise).
    """
    e = edge_index.shape[1]
    idx = edge_index.astype(jnp.int32)
    pos_t = pos.astype(jnp.float32).T                               # (3, N)

    # Pre-gather the endpoint positions in the wrapper; kernel does only the
    # vec / length / SH math (bandwidth-bound, no O(N*E) one-hot work).
    src_t = jnp.take(pos_t, idx[0], axis=1)                         # (3, E)
    dst_t = jnp.take(pos_t, idx[1], axis=1)                         # (3, E)

    # Tile size: large for bandwidth efficiency, clamped for small problems,
    # always a multiple of 128 (lane width).
    tile = max(128, min(_round_up(tile_e, 128), _round_up(e, 128)))
    e_pad = _round_up(e, tile)
    pad = e_pad - e

    def pad_edges(x):
        return jnp.pad(x, ((0, 0), (0, pad)))

    inputs = [pad_edges(dst_t), pad_edges(src_t)]
    has_shift = shift is not None
    if has_shift:
        inputs.append(pad_edges(shift.astype(jnp.float32).T))       # (3, E_pad)

    grid = (e_pad // tile,)
    edge_map = lambda i: (0, i)
    in_spec = pl.BlockSpec((3, tile), edge_map)

    out = pl.pallas_call(
        functools.partial(_edge_sh_kernel, has_shift),
        out_shape=jax.ShapeDtypeStruct((8, e_pad), jnp.float32),
        grid_spec=pltpu.PrefetchScalarGridSpec(
            num_scalar_prefetch=0,
            grid=grid,
            in_specs=[in_spec] * len(inputs),
            out_specs=pl.BlockSpec((8, tile), edge_map),
        ),
        compiler_params=pltpu.CompilerParams(
            dimension_semantics=("parallel",)),
    )(*inputs)

    edge_vec = out[0:3, :e].T                                       # (E, 3)
    edge_lengths = out[3, :e]                                       # (E,)
    edge_sh = out[4:8, :e].T                                        # (E, 4)
    return edge_vec, edge_lengths, edge_sh


def _reference(pos, edge_index, shift):
    vec = pos[edge_index[1]] - pos[edge_index[0]]
    if shift is not None:
        vec = vec + shift
    length = jnp.linalg.norm(vec, axis=1)
    u = vec / jnp.maximum(length, EPS)[:, None]
    sh = jnp.concatenate([jnp.ones((vec.shape[0], 1), jnp.float32), SQRT3 * u], axis=1)
    return vec, length, sh


if __name__ == "__main__":
    key = jax.random.PRNGKey(0)
    k1, k2, k3, k4 = jax.random.split(key, 4)

    n_atoms, n_edges = 32, 200
    pos = jax.random.normal(k1, (n_atoms, 3), jnp.float32) * 3.0
    src = jax.random.randint(k2, (n_edges,), 0, n_atoms, dtype=jnp.int32)
    dst = jax.random.randint(k3, (n_edges,), 0, n_atoms, dtype=jnp.int32)
    edge_index = jnp.stack([src, dst])                              # (2, E)
    shift = jax.random.normal(k4, (n_edges, 3), jnp.float32) * 0.1

    # With shift.
    edge_vec, edge_lengths, edge_sh = jax.block_until_ready(
        spherical_harmonic_edge_attrs(pos, edge_index, shift))
    ref_vec, ref_len, ref_sh = _reference(pos, edge_index, shift)

    assert edge_vec.shape == (n_edges, 3)
    assert edge_lengths.shape == (n_edges,)
    assert edge_sh.shape == (n_edges, 4)
    assert jnp.allclose(edge_vec, ref_vec, atol=1e-5)
    assert jnp.allclose(edge_lengths, ref_len, atol=1e-5)
    assert jnp.allclose(edge_sh, ref_sh, atol=1e-4)

    # Without shift (no zero-shift stream is compiled in).
    edge_vec0, edge_lengths0, edge_sh0 = jax.block_until_ready(
        spherical_harmonic_edge_attrs(pos, edge_index, None))
    ref_vec0, ref_len0, ref_sh0 = _reference(pos, edge_index, None)

    assert jnp.allclose(edge_vec0, ref_vec0, atol=1e-5)
    assert jnp.allclose(edge_lengths0, ref_len0, atol=1e-5)
    assert jnp.allclose(edge_sh0, ref_sh0, atol=1e-4)

    print("KERNEL_OK")
</pallas_src>

<mosaic_0001>
module attributes {stable_mosaic.version = 11 : i64} {
  func.func @_edge_sh_kernel(%arg0: i32, %arg1: memref<3x256xf32, #tpu.memory_space<vmem>>, %arg2: memref<3x256xf32, #tpu.memory_space<vmem>>, %arg3: memref<3x256xf32, #tpu.memory_space<vmem>>, %arg4: memref<8x256xf32, #tpu.memory_space<vmem>>) attributes {dimension_semantics = [#tpu.dimension_semantics<parallel>], iteration_bounds = array<i64: 1>, scalar_prefetch = 0 : i64, scratch_operands = 0 : i64, tpu.core_type = #tpu.core_type<tc>, window_params = [{transform_indices = @transform_0, window_bounds = array<i64: 3, 256>}, {transform_indices = @transform_1, window_bounds = array<i64: 3, 256>}, {transform_indices = @transform_2, window_bounds = array<i64: 3, 256>}, {transform_indices = @transform_3, window_bounds = array<i64: 8, 256>}]} {
    %c0 = arith.constant 0 : index
    %c0_0 = arith.constant 0 : index
    %0 = vector.load %arg1[%c0, %c0_0] : memref<3x256xf32, #tpu.memory_space<vmem>>, vector<3x256xf32>
    %c0_1 = arith.constant 0 : index
    %c0_2 = arith.constant 0 : index
    %1 = vector.load %arg2[%c0_1, %c0_2] : memref<3x256xf32, #tpu.memory_space<vmem>>, vector<3x256xf32>
    %2 = arith.subf %0, %1 : vector<3x256xf32>
    %c0_3 = arith.constant 0 : index
    %c0_4 = arith.constant 0 : index
    %3 = vector.load %arg3[%c0_3, %c0_4] : memref<3x256xf32, #tpu.memory_space<vmem>>, vector<3x256xf32>
    %4 = arith.addf %2, %3 : vector<3x256xf32>
    %5 = arith.mulf %4, %4 : vector<3x256xf32>
    %cst = arith.constant dense<0.000000e+00> : vector<256xf32>
    %6 = vector.multi_reduction <add>, %5, %cst [0] : vector<3x256xf32> to vector<256xf32>
    %7 = vector.shape_cast %6 : vector<256xf32> to vector<1x256xf32>
    %8 = math.sqrt %7 : vector<1x256xf32>
    %cst_5 = arith.constant 1.000000e-24 : f32
    %9 = vector.broadcast %cst_5 : f32 to vector<1x256xf32>
    %10 = arith.maximumf %7, %9 : vector<1x256xf32>
    %11 = math.rsqrt %10 : vector<1x256xf32>
    %12 = vector.broadcast %11 : vector<1x256xf32> to vector<3x256xf32>
    %13 = arith.mulf %4, %12 : vector<3x256xf32>
    %cst_6 = arith.constant 1.000000e+00 : f32
    %14 = vector.broadcast %cst_6 : f32 to vector<1x256xf32>
    %cst_7 = arith.constant 1.73205078 : f32
    %15 = vector.broadcast %cst_7 : f32 to vector<3x256xf32>
    %16 = arith.mulf %15, %13 : vector<3x256xf32>
    %17 = tpu.concatenate %4, %8, %14, %16 in 0 : vector<3x256xf32>, vector<1x256xf32>, vector<1x256xf32>, vector<3x256xf32> -> vector<8x256xf32>
    %c0_8 = arith.constant 0 : index
    %c0_9 = arith.constant 0 : index
    %18 = vector.load %arg4[%c0_8, %c0_9] : memref<8x256xf32, #tpu.memory_space<vmem>>, vector<8x256xf32>
    tpu.vector_store %arg4[%c0_8, %c0_9], %17 {strides = array<i32>} : memref<8x256xf32, #tpu.memory_space<vmem>>, vector<8x256xf32>,
    return
  }
  func.func @transform_0(%arg0: i32) -> (i32, i32) {
    %c0_i32 = arith.constant 0 : i32
    %c0_i32_0 = arith.constant 0 : i32
    return %c0_i32, %arg0 : i32, i32
  }
  func.func @transform_1(%arg0: i32) -> (i32, i32) {
    %c0_i32 = arith.constant 0 : i32
    %c0_i32_0 = arith.constant 0 : i32
    return %c0_i32, %arg0 : i32, i32
  }
  func.func @transform_2(%arg0: i32) -> (i32, i32) {
    %c0_i32 = arith.constant 0 : i32
    %c0_i32_0 = arith.constant 0 : i32
    return %c0_i32, %arg0 : i32, i32
  }
  func.func @transform_3(%arg0: i32) -> (i32, i32) {
    %c0_i32 = arith.constant 0 : i32
    %c0_i32_0 = arith.constant 0 : i32
    return %c0_i32, %arg0 : i32, i32
  }
}

</mosaic_0001>

<llo_original>
// kernel: tpu_custom_call.1
$region0: #{tpu_custom_call.1}
  #allocation0 [shape = 'u32[]', space=smem, size = 0x4, offset = 0x4, fixed_abs, tag = 'smem constant byte address 0x4 - core index']
  #allocation1 [shape = 'u32[144,128]{1,0:T(1,128)}', space=vmem, size = 0x12000, scoped, tag = 'internal scratch']
  %s0 = inlined_call_operand.hbm [shape: f32[3,256], index: 0, kind: input, shape index: {}]
  %s1 = inlined_call_operand.hbm [shape: f32[3,256], index: 1, kind: input, shape index: {}]
  %s2 = inlined_call_operand.hbm [shape: f32[3,256], index: 2, kind: input, shape index: {}]
  %s3 = inlined_call_operand.hbm [shape: f32[8,256], index: 3, kind: output, shape index: {}]
  %s4 = sld [smem:[#allocation0]]
  $region34: #{tpu_custom_call.1} parent=0
    _
  %s6 = ssub.s32 1, %s4
  %s7 = scalar_select 0, %s6, %s4
  $region1: #{tpu_custom_call.1} parent=0
    #allocation2 [shape = 'u8[4096]{0}', space=vmem, size = 0x1000, scoped, tag = 'input window, operand 0, single buffered']
    #allocation3 [shape = 's32[1]{0}', space=sflag, size = 0x4, scoped, tag = 'scoped memory for tpu_custom_call.1']
    #allocation4 [shape = 's32[1]{0}', space=sflag, size = 0x4, scoped, tag = 'scoped memory for tpu_custom_call.1']
    #allocation5 [shape = 'u8[4096]{0}', space=vmem, size = 0x1000, scoped, tag = 'input window, operand 1, single buffered']
    #allocation6 [shape = 's32[1]{0}', space=sflag, size = 0x4, scoped, tag = 'scoped memory for tpu_custom_call.1']
    #allocation7 [shape = 'u8[4096]{0}', space=vmem, size = 0x1000, scoped, tag = 'input window, operand 2, single buffered']
    #allocation8 [shape = 'u8[8192]{0}', space=vmem, size = 0x2000, scoped, tag = 'output window, operand 0, single buffered']
    %8 = vsyncpa [#allocation3], 0
    %9 = vsyncpa [#allocation6], 0
    %10 = vsyncpa [#allocation4], 0
    // Predicated region
    $region2: #{tpu_custom_call.1} parent=1 // pred_check
      _
    $region3: #{tpu_custom_call.1} parent=1 // pred_check_branch
      %12 = sbr.rel (0) target = $region5
    $region4: #{tpu_custom_call.1} parent=1 // pred_region
      %s14 = ssub.s32 128, 128
      %15 = vsyncadd [#allocation3], %s14
      %s17 = sshll.u32 [#allocation2], 4
      %s18 = int_to_ptr.vmem [resolvable:$true] %s17
      %20 = dma.hbm_to_vmem [thread:$0]  %s0, 128, %s18, [#allocation3]
    $region5: #{tpu_custom_call.1} parent=1 // pred_fallthru
      _
    // Predicated region
    $region6: #{tpu_custom_call.1} parent=1 // pred_check
      _
    $region7: #{tpu_custom_call.1} parent=1 // pred_check_branch
      %22 = sbr.rel (0) target = $region9
    $region8: #{tpu_custom_call.1} parent=1 // pred_region
      %s24 = ssub.s32 128, 128
      %25 = vsyncadd [#allocation6], %s24
      %s27 = sshll.u32 [#allocation5], 4
      %s28 = int_to_ptr.vmem [resolvable:$true] %s27
      %30 = dma.hbm_to_vmem [thread:$0]  %s1, 128, %s28, [#allocation6]
    $region9: #{tpu_custom_call.1} parent=1 // pred_fallthru
      _
    // Predicated region
    $region10: #{tpu_custom_call.1} parent=1 // pred_check
      _
    $region11: #{tpu_custom_call.1} parent=1 // pred_check_branch
      %32 = sbr.rel (0) target = $region13
    $region12: #{tpu_custom_call.1} parent=1 // pred_region
      %s34 = ssub.s32 128, 128
      %35 = vsyncadd [#allocation6], %s34
      %s37 = sshll.u32 [#allocation7], 4
      %s38 = int_to_ptr.vmem [resolvable:$true] %s37
      %40 = dma.hbm_to_vmem [thread:$0]  %s2, 128, %s38, [#allocation6]
    $region13: #{tpu_custom_call.1} parent=1 // pred_fallthru
      _
    // Predicated region
    $region14: #{tpu_custom_call.1} parent=1 // pred_check
      _
    $region15: #{tpu_custom_call.1} parent=1 // pred_check_branch
      %42 = sbr.rel (0) target = $region17
    $region16: #{tpu_custom_call.1} parent=1 // pred_region
      %43 = dma.done [#allocation3], 128
    $region17: #{tpu_custom_call.1} parent=1 // pred_fallthru
      _
    // Predicated region
    $region18: #{tpu_custom_call.1} parent=1 // pred_check
      _
    $region19: #{tpu_custom_call.1} parent=1 // pred_check_branch
      %45 = sbr.rel (0) target = $region21
    $region20: #{tpu_custom_call.1} parent=1 // pred_region
      %46 = dma.done [#allocation6], 128
    $region21: #{tpu_custom_call.1} parent=1 // pred_fallthru
      _
    // Predicated region
    $region22: #{tpu_custom_call.1} parent=1 // pred_check
      _
    $region23: #{tpu_custom_call.1} parent=1 // pred_check_branch
      %48 = sbr.rel (0) target = $region25
    $region24: #{tpu_custom_call.1} parent=1 // pred_region
      %49 = dma.done [#allocation6], 128
    $region25: #{tpu_custom_call.1} parent=1 // pred_fallthru
      _
    %v50 = vld [vmem:[#allocation2] sm:$0x77]
    %v51 = vld [vmem:[#allocation5] sm:$0x77]
    %v52 = vsub.f32 %v50, %v51
    %v53 = vld [vmem:[#allocation7] sm:$0x77]
    %v54 = vadd.f32 %v52, %v53
    %v55 = vmul.f32 %v54, %v54
    %v57 = vcombine.high %v55, %v55
    %vm59 = vcmask 1042432
    %v60 = vsel %vm59, %v55, 0.0
    %v61 = vrot.slane %v60, 4
    %v62 = vadd.f32 %v60, %v61
    %v63 = vrot.slane %v62, 2
    %v64 = vadd.f32 %v62, %v63
    %v65 = vrot.slane %v64, 1
    %v66 = vadd.f32 %v64, %v65
    %v67 = vsel %vm59, %v57, 0.0
    %v68 = vrot.slane %v67, 4
    %v69 = vadd.f32 %v67, %v68
    %v70 = vrot.slane %v69, 2
    %v71 = vadd.f32 %v69, %v70
    %v72 = vrot.slane %v71, 1
    %v73 = vadd.f32 %v71, %v72
    %v74 = vrsqrt.pop %v66
    %v75 = vmul.f32 %v66, %v74
    %vm76 = vcmp.eq.f32.partialorder %v66, inf
    %v77 = vsel %vm76, %v66, %v75
    %vm78 = vcmp.eq.f32.partialorder %v66, 0.0
    %v79 = vand.u32 %v66, 2147483648
    %v80 = vsel %vm78, %v79, %v77
    %v81 = vrsqrt.pop %v73
    %v82 = vmul.f32 %v73, %v81
    %vm83 = vcmp.eq.f32.partialorder %v73, inf
    %v84 = vsel %vm83, %v73, %v82
    %vm85 = vcmp.eq.f32.partialorder %v73, 0.0
    %v86 = vand.u32 %v73, 2147483648
    %v87 = vsel %vm85, %v86, %v84
    %v88 = vmax.f32 %v66, 1e-24
    %v89 = vmax.f32 %v73, 1e-24
    %v90 = vrsqrt.pop %v88
    %v91 = vrsqrt.pop %v89
    %v94 = vcombine.low %v90, %v91
    %v96 = vmul.f32 %v54, %v94
    %v97 = vmul.f32 %v96, 1.7320508
    %v99 = vcombine.high %v54, %v54
    %v102 = vcombine.high %v97, %v97
    %v103 = vrot.slane %v97, 3
    %v104 = vrot.slane %v102, 3
    %v107 = vsel %vm59, %v54, %v80
    %v108 = vsel %vm59, %v99, %v87
    %vm109 = vcmask 1043456
    %v110 = vsel %vm109, %v107, 1.0
    %v111 = vsel %vm109, %v108, 1.0
    %vm112 = vcmask 1044480
    %v113 = vsel %vm112, %v110, %v103
    %v114 = vsel %vm112, %v111, %v104
    %115 = vst [vmem:[#allocation8] sm:$0xff] %v113
    %116 = vst [vmem:[#allocation8 + $0x8] sm:$0xff] %v114
    // Predicated region
    $region26: #{tpu_custom_call.1} parent=1 // pred_check
      _
    $region27: #{tpu_custom_call.1} parent=1 // pred_check_branch
      %118 = sbr.rel (0) target = $region29
    $region28: #{tpu_custom_call.1} parent=1 // pred_region
      %s120 = ssub.s32 256, 256
      %121 = vsyncadd [#allocation4], %s120
      %s123 = sshll.u32 [#allocation8], 4
      %s124 = int_to_ptr.vmem [resolvable:$true] %s123
      %126 = dma.vmem_to_hbm [thread:$0]  %s124, 256, %s3, [#allocation4]
    $region29: #{tpu_custom_call.1} parent=1 // pred_fallthru
      _
    // Predicated region
    $region30: #{tpu_custom_call.1} parent=1 // pred_check
      _
    $region31: #{tpu_custom_call.1} parent=1 // pred_check_branch
      %128 = sbr.rel (0) target = $region33
    $region32: #{tpu_custom_call.1} parent=1 // pred_region
      %129 = dma.done [#allocation4], 256
    $region33: #{tpu_custom_call.1} parent=1 // pred_fallthru
      _
    %130 = vsyncpa [#allocation3], 1
    %131 = vsyncpa [#allocation6], 1
    %132 = vsyncpa [#allocation4], 1

</llo_original>
